<compile_context>
chip_gen: v5e
topology: v5e:2x2
jax: 0.10.0
libtpu: 0.0.40
codegen_flags: <defaults>
</compile_context>

<pallas_src>
import functools
import math

import jax
import jax.numpy as jnp
from jax.experimental import pallas as pl
from jax.experimental.pallas import tpu as pltpu


def _round_up(v, m):
    return (v + m - 1) // m * m


def _choose_tile_m(M, K, Dp, in_esz, out_esz, *, budget_bytes, tile_m_cap):
    """Pick a row-tile size TM from a VMEM budget; prefer divisors of M."""
    m8 = _round_up(max(M, 8), 8)
    resident = 2 * K * Dp * in_esz + 6 * Dp * 4          # weight (worst case 2x) + bias/gamma/beta
    per_row = 2 * (K * in_esz + Dp * out_esz)             # double-buffered input + output rows
    avail = budget_bytes - resident
    if avail > per_row * 8:
        tm = max(8, (avail // per_row) // 8 * 8)
    else:
        tm = 8
    tm = int(min(tm, tile_m_cap, m8))
    # Guarantee >= 2 grid programs where possible (keeps both v7x TCs busy).
    if m8 >= 16:
        tm = min(tm, _round_up(m8 // 2, 8))
    # Prefer a TM that divides M exactly: no row padding, no post-kernel slice on M.
    if M % 8 == 0:
        for cand in range(tm, max(8, tm // 2) - 1, -8):
            if M % cand == 0:
                return cand
    return tm


def _proj_ln_kernel(x_ref, w_ref, b_ref, g_ref, beta_ref, o_ref, *, true_d, eps,
                    needs_mask):
    # x_ref: (TM, K) im2col rows; w_ref: (K, Dp); b/g/beta: (1, Dp); o: (TM, Dp)
    y = jnp.dot(x_ref[...], w_ref[...], preferred_element_type=jnp.float32)
    y = y + b_ref[...]  # padded D lanes stay exactly 0 (zero weight cols, zero bias)

    # LayerNorm over the true embed width (biased variance, PyTorch eps).
    inv_d = jnp.float32(1.0 / true_d)
    mean = jnp.sum(y, axis=-1, keepdims=True) * inv_d     # padded lanes are exactly 0
    if needs_mask:
        lane = jax.lax.broadcasted_iota(jnp.int32, y.shape, 1)
        centered = jnp.where(lane < true_d, y - mean, 0.0)
    else:
        centered = y - mean
    var = jnp.sum(centered * centered, axis=-1, keepdims=True) * inv_d
    y_hat = centered * jax.lax.rsqrt(var + jnp.float32(eps))
    o_ref[...] = (y_hat * g_ref[...] + beta_ref[...]).astype(o_ref.dtype)


def overlap_patch_embed(x, conv_w, conv_b, ln_gamma, ln_beta, *, stride,
                        matmul_dtype=jnp.bfloat16, out_dtype=jnp.float32,
                        tile_m=512, eps=1e-5,
                        vmem_block_budget=24 * 1024 * 1024):
    """x: (B, C, H, W). conv_w: (E, C, kh, kw). Returns ((B, N, E), H_out, W_out).

    matmul_dtype: dtype fed to the MXU (bf16 by default on all generations;
    accumulation, bias and LayerNorm remain float32).
    """
    B, C, H, W = x.shape
    E, _, kh, kw = conv_w.shape
    ph, pw = kh // 2, kw // 2

    H_out = (H + 2 * ph - kh) // stride + 1
    W_out = (W + 2 * pw - kw) // stride + 1
    N = H_out * W_out
    K = C * kh * kw
    M = B * N

    # --- im2col: kh*kw static strided slices concatenated channel-last (cheap
    #     contiguous copies; flatten order (kh, kw, C)) ---
    xp = jnp.pad(x, ((0, 0), (0, 0), (ph, ph), (pw, pw)))
    xp = jnp.transpose(xp, (0, 2, 3, 1)).astype(matmul_dtype)       # (B, Hp, Wp, C)
    h_stop = (H_out - 1) * stride + 1
    w_stop = (W_out - 1) * stride + 1
    slabs = [xp[:, i:i + h_stop:stride, j:j + w_stop:stride, :]
             for i in range(kh) for j in range(kw)]                 # each (B, Ho, Wo, C)
    patches = jnp.concatenate(slabs, axis=-1).reshape(M, K)         # (M, K)

    # weight (E, C, kh, kw) -> (kh, kw, C, E) -> (K, E), matching flatten order
    w2d = jnp.transpose(conv_w, (2, 3, 1, 0)).reshape(K, E).astype(matmul_dtype)

    # --- lane-dense embed dim; K left unpadded in HBM ---
    Dp = _round_up(E, 128)
    needs_mask = Dp != E
    in_esz = jnp.dtype(matmul_dtype).itemsize
    out_esz = jnp.dtype(out_dtype).itemsize

    TM = _choose_tile_m(M, K, Dp, in_esz, out_esz,
                        budget_bytes=vmem_block_budget, tile_m_cap=tile_m)
    Mp = _round_up(M, TM)

    if Mp != M:
        patches = jnp.pad(patches, ((0, Mp - M), (0, 0)))
    if needs_mask:
        w2d = jnp.pad(w2d, ((0, 0), (0, Dp - E)))
    b2d = jnp.pad(conv_b.astype(jnp.float32), (0, Dp - E)).reshape(1, Dp)
    g2d = jnp.pad(ln_gamma.astype(jnp.float32), (0, Dp - E)).reshape(1, Dp)
    be2d = jnp.pad(ln_beta.astype(jnp.float32), (0, Dp - E)).reshape(1, Dp)

    kernel = functools.partial(_proj_ln_kernel, true_d=E, eps=eps,
                               needs_mask=needs_mask)

    # VMEM budgeting (v5e default scoped limit is only 16 MiB; v7x has 64 MiB
    # physical, so cap the raise at 48 MiB).
    resident_bytes = 2 * K * Dp * in_esz + 6 * Dp * 4
    vmem_needed = resident_bytes + TM * 2 * (K * in_esz + Dp * out_esz)
    vmem_limit = int(min(max(vmem_needed + (8 << 20), 32 << 20), 48 << 20))

    cost = pl.CostEstimate(
        flops=2 * M * K * E,
        transcendentals=M,
        bytes_accessed=int(Mp * K * in_esz + K * Dp * in_esz + Mp * Dp * out_esz))

    def run(single_buffer_resident):
        res_kw = {}
        if single_buffer_resident and hasattr(pl, "Buffered"):
            # Grid-invariant operands: no point double-buffering them.
            res_kw = {"pipeline_mode": pl.Buffered(1)}
        return pl.pallas_call(
            kernel,
            out_shape=jax.ShapeDtypeStruct((Mp, Dp), out_dtype),
            grid=(Mp // TM,),
            in_specs=[
                pl.BlockSpec((TM, K), lambda i: (i, 0)),             # row tile (pipelined)
                pl.BlockSpec((K, Dp), lambda i: (0, 0), **res_kw),   # resident weight
                pl.BlockSpec((1, Dp), lambda i: (0, 0), **res_kw),   # bias
                pl.BlockSpec((1, Dp), lambda i: (0, 0), **res_kw),   # ln gamma
                pl.BlockSpec((1, Dp), lambda i: (0, 0), **res_kw),   # ln beta
            ],
            out_specs=pl.BlockSpec((TM, Dp), lambda i: (i, 0)),
            compiler_params=pltpu.CompilerParams(
                dimension_semantics=("parallel",),     # shards tiles across TCs on v7x
                vmem_limit_bytes=vmem_limit),
            cost_estimate=cost,
        )(patches, w2d, b2d, g2d, be2d)

    try:
        out2d = run(True)
    except Exception:
        # Fallback if this JAX build rejects single-buffered pipeline_mode.
        out2d = run(False)

    if Mp == M and Dp == E:
        out = out2d.reshape(B, N, E)                 # free reshape, no copy
    else:
        out = out2d[:M, :E].reshape(B, N, E)
    return out, H_out, W_out


def _reference(x, conv_w, conv_b, ln_gamma, ln_beta, *, stride):
    """Pure-JAX reference for correctness check."""
    kh, kw = conv_w.shape[2], conv_w.shape[3]
    y = jax.lax.conv_general_dilated(
        x, conv_w,
        window_strides=(stride, stride),
        padding=((kh // 2, kh // 2), (kw // 2, kw // 2)),
        dimension_numbers=("NCHW", "OIHW", "NCHW"),
        precision=jax.lax.Precision.HIGHEST,
    ) + conv_b[None, :, None, None]
    B, E, Ho, Wo = y.shape
    y = y.reshape(B, E, Ho * Wo).transpose(0, 2, 1)  # (B, N, E)
    mean = y.mean(-1, keepdims=True)
    var = ((y - mean) ** 2).mean(-1, keepdims=True)
    y = (y - mean) / jnp.sqrt(var + 1e-5) * ln_gamma + ln_beta
    return y, Ho, Wo


if __name__ == "__main__":
    # Small shapes consistent with the module: img=16, patch=7, stride=4,
    # in_chans=4, embed_dim=32, batch=2.
    B, C, HW = 2, 4, 16
    patch_size, stride, embed_dim = 7, 4, 32

    key = jax.random.PRNGKey(0)
    kx, kw_ = jax.random.split(key)

    x = jax.random.normal(kx, (B, C, HW, HW), dtype=jnp.float32)

    # Deterministic parameter init mirroring _init_weights:
    fan_out = patch_size * patch_size * embed_dim
    conv_w = jax.random.normal(kw_, (embed_dim, C, patch_size, patch_size),
                               dtype=jnp.float32) * math.sqrt(2.0 / fan_out)
    conv_b = jnp.zeros((embed_dim,), jnp.float32)
    ln_gamma = jnp.ones((embed_dim,), jnp.float32)
    ln_beta = jnp.zeros((embed_dim,), jnp.float32)

    ref, Hr, Wr = _reference(x, conv_w, conv_b, ln_gamma, ln_beta, stride=stride)

    # Default path: bf16 MXU operands, f32 accumulation + LayerNorm.
    out, H_out, W_out = overlap_patch_embed(
        x, conv_w, conv_b, ln_gamma, ln_beta, stride=stride)
    out = jax.block_until_ready(out)
    assert (H_out, W_out) == (Hr, Wr)
    assert out.shape == (B, H_out * W_out, embed_dim)
    assert jnp.allclose(out, ref, atol=1e-1, rtol=1e-1)

    # f32-operand path (tighter tolerance).
    out32, H32, W32 = overlap_patch_embed(
        x, conv_w, conv_b, ln_gamma, ln_beta, stride=stride,
        matmul_dtype=jnp.float32)
    out32 = jax.block_until_ready(out32)
    assert (H32, W32) == (Hr, Wr)
    assert jnp.allclose(out32, ref, atol=1e-2, rtol=1e-2)

    print("KERNEL_OK")
</pallas_src>

<mosaic_0001>
module attributes {stable_mosaic.version = 11 : i64} {
  func.func @_proj_ln_kernel(%arg0: i32, %arg1: memref<16x196xbf16, #tpu.memory_space<vmem>>, %arg2: memref<196x128xbf16, #tpu.memory_space<vmem>>, %arg3: memref<1x128xf32, #tpu.memory_space<vmem>>, %arg4: memref<1x128xf32, #tpu.memory_space<vmem>>, %arg5: memref<1x128xf32, #tpu.memory_space<vmem>>, %arg6: memref<16x128xf32, #tpu.memory_space<vmem>>) attributes {dimension_semantics = [#tpu.dimension_semantics<parallel>], iteration_bounds = array<i64: 2>, scalar_prefetch = 0 : i64, scratch_operands = 0 : i64, tpu.core_type = #tpu.core_type<tc>, window_params = [{transform_indices = @transform_0, window_bounds = array<i64: 16, 196>}, {pipeline_mode = #tpu.pipeline_mode<synchronous>, transform_indices = @transform_1, window_bounds = array<i64: 196, 128>}, {pipeline_mode = #tpu.pipeline_mode<synchronous>, transform_indices = @transform_2, window_bounds = array<i64: 1, 128>}, {pipeline_mode = #tpu.pipeline_mode<synchronous>, transform_indices = @transform_3, window_bounds = array<i64: 1, 128>}, {pipeline_mode = #tpu.pipeline_mode<synchronous>, transform_indices = @transform_4, window_bounds = array<i64: 1, 128>}, {transform_indices = @transform_5, window_bounds = array<i64: 16, 128>}]} {
    %c0 = arith.constant 0 : index
    %c0_0 = arith.constant 0 : index
    %0 = vector.load %arg1[%c0, %c0_0] : memref<16x196xbf16, #tpu.memory_space<vmem>>, vector<16x196xbf16>
    %c0_1 = arith.constant 0 : index
    %c0_2 = arith.constant 0 : index
    %1 = vector.load %arg2[%c0_1, %c0_2] : memref<196x128xbf16, #tpu.memory_space<vmem>>, vector<196x128xbf16>
    %cst = arith.constant dense<0.000000e+00> : vector<16x128xf32>
    %2 = tpu.matmul %0, %1, %cst {dimension_numbers = #tpu.dot_dimension_numbers<[1], [0], [0], [1], [0, 0, 1, 1], [], []>} : vector<16x196xbf16>, vector<196x128xbf16>, vector<16x128xf32> -> vector<16x128xf32>
    %c0_3 = arith.constant 0 : index
    %c0_4 = arith.constant 0 : index
    %3 = vector.load %arg3[%c0_3, %c0_4] : memref<1x128xf32, #tpu.memory_space<vmem>>, vector<1x128xf32>
    %4 = vector.broadcast %3 : vector<1x128xf32> to vector<16x128xf32>
    %5 = arith.addf %2, %4 : vector<16x128xf32>
    %cst_5 = arith.constant dense<0.000000e+00> : vector<16xf32>
    %6 = vector.multi_reduction <add>, %5, %cst_5 [1] : vector<16x128xf32> to vector<16xf32>
    %7 = vector.shape_cast %6 : vector<16xf32> to vector<16x1xf32>
    %cst_6 = arith.constant 3.125000e-02 : f32
    %8 = vector.broadcast %cst_6 : f32 to vector<16x1xf32>
    %9 = arith.mulf %7, %8 : vector<16x1xf32>
    %10 = tpu.iota {dimensions = array<i32: 1>} : vector<16x128xi32>
    %c32_i32 = arith.constant 32 : i32
    %11 = vector.broadcast %c32_i32 : i32 to vector<16x128xi32>
    %12 = arith.cmpi slt, %10, %11 : vector<16x128xi32>
    %13 = vector.broadcast %9 : vector<16x1xf32> to vector<16x128xf32>
    %14 = arith.subf %5, %13 : vector<16x128xf32>
    %cst_7 = arith.constant 0.000000e+00 : f32
    %15 = vector.broadcast %cst_7 : f32 to vector<16x128xf32>
    %16 = arith.select %12, %14, %15 : vector<16x128xi1>, vector<16x128xf32>
    %17 = arith.mulf %16, %16 : vector<16x128xf32>
    %cst_8 = arith.constant dense<0.000000e+00> : vector<16xf32>
    %18 = vector.multi_reduction <add>, %17, %cst_8 [1] : vector<16x128xf32> to vector<16xf32>
    %19 = vector.shape_cast %18 : vector<16xf32> to vector<16x1xf32>
    %cst_9 = arith.constant 3.125000e-02 : f32
    %20 = vector.broadcast %cst_9 : f32 to vector<16x1xf32>
    %21 = arith.mulf %19, %20 : vector<16x1xf32>
    %cst_10 = arith.constant 9.99999974E-6 : f32
    %22 = vector.broadcast %cst_10 : f32 to vector<16x1xf32>
    %23 = arith.addf %21, %22 : vector<16x1xf32>
    %24 = math.rsqrt %23 : vector<16x1xf32>
    %25 = vector.broadcast %24 : vector<16x1xf32> to vector<16x128xf32>
    %26 = arith.mulf %16, %25 : vector<16x128xf32>
    %c0_11 = arith.constant 0 : index
    %c0_12 = arith.constant 0 : index
    %27 = vector.load %arg4[%c0_11, %c0_12] : memref<1x128xf32, #tpu.memory_space<vmem>>, vector<1x128xf32>
    %28 = vector.broadcast %27 : vector<1x128xf32> to vector<16x128xf32>
    %29 = arith.mulf %26, %28 : vector<16x128xf32>
    %c0_13 = arith.constant 0 : index
    %c0_14 = arith.constant 0 : index
    %30 = vector.load %arg5[%c0_13, %c0_14] : memref<1x128xf32, #tpu.memory_space<vmem>>, vector<1x128xf32>
    %31 = vector.broadcast %30 : vector<1x128xf32> to vector<16x128xf32>
    %32 = arith.addf %29, %31 : vector<16x128xf32>
    %c0_15 = arith.constant 0 : index
    %c0_16 = arith.constant 0 : index
    %33 = vector.load %arg6[%c0_15, %c0_16] : memref<16x128xf32, #tpu.memory_space<vmem>>, vector<16x128xf32>
    tpu.vector_store %arg6[%c0_15, %c0_16], %32 {strides = array<i32>} : memref<16x128xf32, #tpu.memory_space<vmem>>, vector<16x128xf32>,
    return
  }
  func.func @transform_0(%arg0: i32) -> (i32, i32) {
    %c0_i32 = arith.constant 0 : i32
    %c0_i32_0 = arith.constant 0 : i32
    return %arg0, %c0_i32 : i32, i32
  }
  func.func @transform_1(%arg0: i32) -> (i32, i32) {
    %c0_i32 = arith.constant 0 : i32
    %c0_i32_0 = arith.constant 0 : i32
    %c0_i32_1 = arith.constant 0 : i32
    return %c0_i32, %c0_i32_0 : i32, i32
  }
  func.func @transform_2(%arg0: i32) -> (i32, i32) {
    %c0_i32 = arith.constant 0 : i32
    %c0_i32_0 = arith.constant 0 : i32
    %c0_i32_1 = arith.constant 0 : i32
    return %c0_i32, %c0_i32_0 : i32, i32
  }
  func.func @transform_3(%arg0: i32) -> (i32, i32) {
    %c0_i32 = arith.constant 0 : i32
    %c0_i32_0 = arith.constant 0 : i32
    %c0_i32_1 = arith.constant 0 : i32
    return %c0_i32, %c0_i32_0 : i32, i32
  }
  func.func @transform_4(%arg0: i32) -> (i32, i32) {
    %c0_i32 = arith.constant 0 : i32
    %c0_i32_0 = arith.constant 0 : i32
    %c0_i32_1 = arith.constant 0 : i32
    return %c0_i32, %c0_i32_0 : i32, i32
  }
  func.func @transform_5(%arg0: i32) -> (i32, i32) {
    %c0_i32 = arith.constant 0 : i32
    %c0_i32_0 = arith.constant 0 : i32
    return %arg0, %c0_i32 : i32, i32
  }
}

module attributes {stable_mosaic.version = 11 : i64} {
  func.func @_proj_ln_kernel(%arg0: i32, %arg1: memref<16x196xbf16, #tpu.memory_space<vmem>>, %arg2: memref<196x128xbf16, #tpu.memory_space<vmem>>, %arg3: memref<1x128xf32, #tpu.memory_space<vmem>>, %arg4: memref<1x128xf32, #tpu.memory_space<vmem>>, %arg5: memref<1x128xf32, #tpu.memory_space<vmem>>, %arg6: memref<16x128xf32, #tpu.memory_space<vmem>>) attributes {dimension_semantics = [#tpu.dimension_semantics<parallel>], iteration_bounds = array<i64: 2>, scalar_prefetch = 0 : i64, scratch_operands = 0 : i64, tpu.core_type = #tpu.core_type<tc>, window_params = [{transform_indices = @transform_0, window_bounds = array<i64: 16, 196>}, {pipeline_mode = #tpu.pipeline_mode<synchronous>, transform_indices = @transform_1, window_bounds = array<i64: 196, 128>}, {pipeline_mode = #tpu.pipeline_mode<synchronous>, transform_indices = @transform_2, window_bounds = array<i64: 1, 128>}, {pipeline_mode = #tpu.pipeline_mode<synchronous>, transform_indices = @transform_3, window_bounds = array<i64: 1, 128>}, {pipeline_mode = #tpu.pipeline_mode<synchronous>, transform_indices = @transform_4, window_bounds = array<i64: 1, 128>}, {transform_indices = @transform_5, window_bounds = array<i64: 16, 128>}]} {
    %c0 = arith.constant 0 : index
    %c0_0 = arith.constant 0 : index
    %0 = vector.load %arg1[%c0, %c0_0] : memref<16x196xbf16, #tpu.memory_space<vmem>>, vector<16x196xbf16>
    %c0_1 = arith.constant 0 : index
    %c0_2 = arith.constant 0 : index
    %1 = vector.load %arg2[%c0_1, %c0_2] : memref<196x128xbf16, #tpu.memory_space<vmem>>, vector<196x128xbf16>
    %cst = arith.constant dense<0.000000e+00> : vector<16x128xf32>
    %2 = tpu.matmul %0, %1, %cst {dimension_numbers = #tpu.dot_dimension_numbers<[1], [0], [0], [1], [0, 0, 1, 1], [], []>} : vector<16x196xbf16>, vector<196x128xbf16>, vector<16x128xf32> -> vector<16x128xf32>
    %c0_3 = arith.constant 0 : index
    %c0_4 = arith.constant 0 : index
    %3 = vector.load %arg3[%c0_3, %c0_4] : memref<1x128xf32, #tpu.memory_space<vmem>>, vector<1x128xf32>
    %4 = vector.broadcast %3 : vector<1x128xf32> to vector<16x128xf32>
    %5 = arith.addf %2, %4 : vector<16x128xf32>
    %cst_5 = arith.constant dense<0.000000e+00> : vector<16xf32>
    %6 = vector.multi_reduction <add>, %5, %cst_5 [1] : vector<16x128xf32> to vector<16xf32>
    %7 = vector.shape_cast %6 : vector<16xf32> to vector<16x1xf32>
    %cst_6 = arith.constant 3.125000e-02 : f32
    %8 = vector.broadcast %cst_6 : f32 to vector<16x1xf32>
    %9 = arith.mulf %7, %8 : vector<16x1xf32>
    %10 = tpu.iota {dimensions = array<i32: 1>} : vector<16x128xi32>
    %c32_i32 = arith.constant 32 : i32
    %11 = vector.broadcast %c32_i32 : i32 to vector<16x128xi32>
    %12 = arith.cmpi slt, %10, %11 : vector<16x128xi32>
    %13 = vector.broadcast %9 : vector<16x1xf32> to vector<16x128xf32>
    %14 = arith.subf %5, %13 : vector<16x128xf32>
    %cst_7 = arith.constant 0.000000e+00 : f32
    %15 = vector.broadcast %cst_7 : f32 to vector<16x128xf32>
    %16 = arith.select %12, %14, %15 : vector<16x128xi1>, vector<16x128xf32>
    %17 = arith.mulf %16, %16 : vector<16x128xf32>
    %cst_8 = arith.constant dense<0.000000e+00> : vector<16xf32>
    %18 = vector.multi_reduction <add>, %17, %cst_8 [1] : vector<16x128xf32> to vector<16xf32>
    %19 = vector.shape_cast %18 : vector<16xf32> to vector<16x1xf32>
    %cst_9 = arith.constant 3.125000e-02 : f32
    %20 = vector.broadcast %cst_9 : f32 to vector<16x1xf32>
    %21 = arith.mulf %19, %20 : vector<16x1xf32>
    %cst_10 = arith.constant 9.99999974E-6 : f32
    %22 = vector.broadcast %cst_10 : f32 to vector<16x1xf32>
    %23 = arith.addf %21, %22 : vector<16x1xf32>
    %24 = math.rsqrt %23 : vector<16x1xf32>
    %25 = vector.broadcast %24 : vector<16x1xf32> to vector<16x128xf32>
    %26 = arith.mulf %16, %25 : vector<16x128xf32>
    %c0_11 = arith.constant 0 : index
    %c0_12 = arith.constant 0 : index
    %27 = vector.load %arg4[%c0_11, %c0_12] : memref<1x128xf32, #tpu.memory_space<vmem>>, vector<1x128xf32>
    %28 = vector.broadcast %27 : vector<1x128xf32> to vector<16x128xf32>
    %29 = arith.mulf %26, %28 : vector<16x128xf32>
    %c0_13 = arith.constant 0 : index
    %c0_14 = arith.constant 0 : index
    %30 = vector.load %arg5[%c0_13, %c0_14] : memref<1x128xf32, #tpu.memory_space<vmem>>, vector<1x128xf32>
    %31 = vector.broadcast %30 : vector<1x128xf32> to vector<16x128xf32>
    %32 = arith.addf %29, %31 : vector<16x128xf32>
    %c0_15 = arith.constant 0 : index
    %c0_16 = arith.constant 0 : index
    %33 = vector.load %arg6[%c0_15, %c0_16] : memref<16x128xf32, #tpu.memory_space<vmem>>, vector<16x128xf32>
    tpu.vector_store %arg6[%c0_15, %c0_16], %32 {strides = array<i32>} : memref<16x128xf32, #tpu.memory_space<vmem>>, vector<16x128xf32>,
    return
  }
  func.func @transform_0(%arg0: i32) -> (i32, i32) {
    %c0_i32 = arith.constant 0 : i32
    %c0_i32_0 = arith.constant 0 : i32
    return %arg0, %c0_i32 : i32, i32
  }
  func.func @transform_1(%arg0: i32) -> (i32, i32) {
    %c0_i32 = arith.constant 0 : i32
    %c0_i32_0 = arith.constant 0 : i32
    %c0_i32_1 = arith.constant 0 : i32
    return %c0_i32, %c0_i32_0 : i32, i32
  }
  func.func @transform_2(%arg0: i32) -> (i32, i32) {
    %c0_i32 = arith.constant 0 : i32
    %c0_i32_0 = arith.constant 0 : i32
    %c0_i32_1 = arith.constant 0 : i32
    return %c0_i32, %c0_i32_0 : i32, i32
  }
  func.func @transform_3(%arg0: i32) -> (i32, i32) {
    %c0_i32 = arith.constant 0 : i32
    %c0_i32_0 = arith.constant 0 : i32
    %c0_i32_1 = arith.constant 0 : i32
    return %c0_i32, %c0_i32_0 : i32, i32
  }
  func.func @transform_4(%arg0: i32) -> (i32, i32) {
    %c0_i32 = arith.constant 0 : i32
    %c0_i32_0 = arith.constant 0 : i32
    %c0_i32_1 = arith.constant 0 : i32
    return %c0_i32, %c0_i32_0 : i32, i32
  }
  func.func @transform_5(%arg0: i32) -> (i32, i32) {
    %c0_i32 = arith.constant 0 : i32
    %c0_i32_0 = arith.constant 0 : i32
    return %arg0, %c0_i32 : i32, i32
  }
}

</mosaic_0001>

<llo_original>
// kernel: tpu_custom_call.1
$region0: #{tpu_custom_call.1}
  #allocation0 [shape = 'u32[]', space=smem, size = 0x4, offset = 0x4, fixed_abs, tag = 'smem constant byte address 0x4 - core index']
  #allocation1 [shape = 'u32[72,128]{1,0:T(1,128)}', space=vmem, size = 0x9000, scoped, tag = 'internal scratch']
  %s0 = inlined_call_operand.hbm [shape: bf16[32,196], index: 0, kind: input, shape index: {}]
  %s1 = inlined_call_operand.hbm [shape: bf16[196,128], index: 1, kind: input, shape index: {}]
  %s2 = inlined_call_operand.vmem [shape: f32[1,128], index: 2, kind: input, shape index: {}]
  %s3 = inlined_call_operand.vmem [shape: f32[1,128], index: 3, kind: input, shape index: {}]
  %s4 = inlined_call_operand.vmem [shape: f32[1,128], index: 4, kind: input, shape index: {}]
  %s5 = inlined_call_operand.hbm [shape: f32[32,128], index: 5, kind: output, shape index: {}]
  %s6 = sld [smem:[#allocation0]]
  $region61: #{tpu_custom_call.1} parent=0
    _
  %s8 = ssub.s32 1, %s6
  %s9 = scalar_select 0, %s8, %s6
  $region1: #{tpu_custom_call.1} parent=0
    #allocation2 [shape = 'u8[16384]{0}', space=vmem, size = 0x4000, scoped, tag = 'input window, operand 0']
    #allocation3 [shape = 's32[2]{0}', space=sflag, size = 0x8, scoped, tag = 'scoped memory for tpu_custom_call.1']
    #allocation4 [shape = 's32[2]{0}', space=sflag, size = 0x8, scoped, tag = 'scoped memory for tpu_custom_call.1']
    #allocation5 [shape = 'u8[51200]{0}', space=vmem, size = 0xc800, scoped, tag = 'input window, operand 1, single buffered']
    #allocation6 [shape = 's32[1]{0}', space=sflag, size = 0x4, scoped, tag = 'scoped memory for tpu_custom_call.1']
    #allocation7 [shape = 'u8[16384]{0}', space=vmem, size = 0x4000, scoped, tag = 'output window, operand 0']
    %10 = vsyncpa [#allocation3], 0
    %s11 = scalar_lea.sflag [#allocation3], 1
    %12 = vsyncpa %s11, 0
    %13 = vsyncpa [#allocation6], 0
    %14 = vsyncpa [#allocation4], 0
    %s15 = scalar_lea.sflag [#allocation4], 1
    %16 = vsyncpa %s15, 0
    loop: start=0, step=1, limit=4
    $region2: #{tpu_custom_call.1} parent=1 // loop_pre_header
      _
    $region3: #{tpu_custom_call.1} parent=1 // loop_header
      %s18 = sphi 0, %s22
      %p19 = scmp.ge.s32.totalorder %s18, 4
      %s28 = sphi 0, %s30
      %s31 = sphi 0, %s28
      %s32 = sphi 0, %s31
      %s48 = sphi 0, %s32
      %s52 = sphi 0, %s52
      %s54 = sphi 0, %s52
      %s55 = sphi 0, %s54
      %s69 = sphi 0, %s55
      %s73 = sphi 0, %s73
      %s75 = sphi 0, %s73
      %s76 = sphi 0, %s75
      %s90 = sphi 0, %s76
      %s94 = sphi 0, %s94
      %s96 = sphi 0, %s94
      %s97 = sphi 0, %s96
      %s111 = sphi 0, %s97
      %s115 = sphi 0, %s115
      %s117 = sphi 0, %s115
      %s118 = sphi 0, %s117
      %s132 = sphi 0, %s118
      %s138 = sphi 0, %s140
      %s141 = sphi 0, %s138
      %s142 = sphi 0, %s141
      %s158 = sphi 0, %s142
    $region4: #{tpu_custom_call.1} parent=1 // loop_header_branch
      %21 = sbr.rel (%p19) target = $region8
    $region5: #{tpu_custom_call.1} parent=1 // loop_body
      %s23 = ssub.s32 %s18, 1
      %s24 = ssub.s32 %s18, 2
      %s25 = sadd.s32 %s18, 1
      %s26 = ssub.s32 %s18, %s25
      %p27 = scmp.eq.s32.totalorder %s26, 0
      %s29 = sadd.s32 %s28, 1
      %s30 = scalar_select %p27, %s28, %s29
      %p33 = pneg %p27
      %p34 = scmp.eq.s32.totalorder %s18, 1
      %p35 = por %p33, %p34
      %p36 = scmp.ne.s32.totalorder %s28, %s31
      %p37 = scmp.eq.s32.totalorder %s18, 0
      %p38 = por %p36, %p37
      %p39 = scmp.ne.s32.totalorder %s28, %s31
      %p40 = scmp.eq.s32.totalorder %s23, 1
      %p41 = por %p39, %p40
      %p42 = scmp.ne.s32.totalorder %s31, %s32
      %p43 = scmp.eq.s32.totalorder %s23, 0
      %p44 = por %p42, %p43
      %p45 = scmp.ne.s32.totalorder %s31, %s32
      %p46 = scmp.eq.s32.totalorder %s24, 1
      %p47 = por %p45, %p46
      %p49 = scmp.ne.s32.totalorder %s32, %s48
      %p50 = scmp.eq.s32.totalorder %s24, 0
      %p51 = por %p49, %p50
      %s53 = sadd.s32 %s52, 1
      %p56 = scmp.eq.s32.totalorder %s18, 1
      %p57 = scmp.ne.s32.totalorder %s52, %s54
      %p58 = scmp.eq.s32.totalorder %s18, 0
      %p59 = por %p57, %p58
      %p60 = scmp.ne.s32.totalorder %s52, %s54
      %p61 = scmp.eq.s32.totalorder %s23, 1
      %p62 = por %p60, %p61
      %p63 = scmp.ne.s32.totalorder %s54, %s55
      %p64 = scmp.eq.s32.totalorder %s23, 0
      %p65 = por %p63, %p64
      %p66 = scmp.ne.s32.totalorder %s54, %s55
      %p67 = scmp.eq.s32.totalorder %s24, 1
      %p68 = por %p66, %p67
      %p70 = scmp.ne.s32.totalorder %s55, %s69
      %p71 = scmp.eq.s32.totalorder %s24, 0
      %p72 = por %p70, %p71
      %s74 = sadd.s32 %s73, 1
      %p77 = scmp.eq.s32.totalorder %s18, 1
      %p78 = scmp.ne.s32.totalorder %s73, %s75
      %p79 = scmp.eq.s32.totalorder %s18, 0
      %p80 = por %p78, %p79
      %p81 = scmp.ne.s32.totalorder %s73, %s75
      %p82 = scmp.eq.s32.totalorder %s23, 1
      %p83 = por %p81, %p82
      %p84 = scmp.ne.s32.totalorder %s75, %s76
      %p85 = scmp.eq.s32.totalorder %s23, 0
      %p86 = por %p84, %p85
      %p87 = scmp.ne.s32.totalorder %s75, %s76
      %p88 = scmp.eq.s32.totalorder %s24, 1
      %p89 = por %p87, %p88
      %p91 = scmp.ne.s32.totalorder %s76, %s90
      %p92 = scmp.eq.s32.totalorder %s24, 0
      %p93 = por %p91, %p92
      %s95 = sadd.s32 %s94, 1
      %p98 = scmp.eq.s32.totalorder %s18, 1
      %p99 = scmp.ne.s32.totalorder %s94, %s96
      %p100 = scmp.eq.s32.totalorder %s18, 0
      %p101 = por %p99, %p100
      %p102 = scmp.ne.s32.totalorder %s94, %s96
      %p103 = scmp.eq.s32.totalorder %s23, 1
      %p104 = por %p102, %p103
      %p105 = scmp.ne.s32.totalorder %s96, %s97
      %p106 = scmp.eq.s32.totalorder %s23, 0
      %p107 = por %p105, %p106
      %p108 = scmp.ne.s32.totalorder %s96, %s97
      %p109 = scmp.eq.s32.totalorder %s24, 1
      %p110 = por %p108, %p109
      %p112 = scmp.ne.s32.totalorder %s97, %s111
      %p113 = scmp.eq.s32.totalorder %s24, 0
      %p114 = por %p112, %p113
      %s116 = sadd.s32 %s115, 1
      %p119 = scmp.eq.s32.totalorder %s18, 1
      %p120 = scmp.ne.s32.totalorder %s115, %s117
      %p121 = scmp.eq.s32.totalorder %s18, 0
      %p122 = por %p120, %p121
      %p123 = scmp.ne.s32.totalorder %s115, %s117
      %p124 = scmp.eq.s32.totalorder %s23, 1
      %p125 = por %p123, %p124
      %p126 = scmp.ne.s32.totalorder %s117, %s118
      %p127 = scmp.eq.s32.totalorder %s23, 0
      %p128 = por %p126, %p127
      %p129 = scmp.ne.s32.totalorder %s117, %s118
      %p130 = scmp.eq.s32.totalorder %s24, 1
      %p131 = por %p129, %p130
      %p133 = scmp.ne.s32.totalorder %s118, %s132
      %p134 = scmp.eq.s32.totalorder %s24, 0
      %p135 = por %p133, %p134
      %s136 = ssub.s32 %s18, %s25
      %p137 = scmp.eq.s32.totalorder %s136, 0
      %s139 = sadd.s32 %s138, 1
      %s140 = scalar_select %p137, %s138, %s139
      %p143 = pneg %p137
      %p144 = scmp.eq.s32.totalorder %s18, 1
      %p145 = por %p143, %p144
      %p146 = scmp.ne.s32.totalorder %s138, %s141
      %p147 = scmp.eq.s32.totalorder %s18, 0
      %p148 = por %p146, %p147
      %p149 = scmp.ne.s32.totalorder %s138, %s141
      %p150 = scmp.eq.s32.totalorder %s23, 1
      %p151 = por %p149, %p150
      %p152 = scmp.ne.s32.totalorder %s141, %s142
      %p153 = scmp.eq.s32.totalorder %s23, 0
      %p154 = por %p152, %p153
      %p155 = scmp.ne.s32.totalorder %s141, %s142
      %p156 = scmp.eq.s32.totalorder %s24, 1
      %p157 = por %p155, %p156
      %p159 = scmp.ne.s32.totalorder %s142, %s158
      %p160 = scmp.eq.s32.totalorder %s24, 0
      %p161 = por %p159, %p160
      %p162 = scmp.le.s32.totalorder 1, %s18
      %p163 = scmp.lt.s32.totalorder %s18, 3
      %p164 = pnand %p162, %p163
      %p165 = pneg %p164
      // Predicated region
      $region9: #{tpu_custom_call.1} parent=5 // pred_check
        _
      $region10: #{tpu_custom_call.1} parent=5 // pred_check_branch
        %167 = sbr.rel (%p164) target = $region12
      $region11: #{tpu_custom_call.1} parent=5 // pred_region
        %s168 = ssub.s32 %s18, 1
        // Predicated region
        $region13: #{tpu_custom_call.1} parent=11 // pred_check
          %p169 = pneg %p65
        $region14: #{tpu_custom_call.1} parent=11 // pred_check_branch
          %171 = sbr.rel (%p169) target = $region16
        $region15: #{tpu_custom_call.1} parent=11 // pred_region
          %173 = vsyncadd [#allocation6], 0
          %s174 = sshll.u32 %s1, 4
          %s175 = int_to_ptr.hbm [resolvable:$true] %s174
          %s176 = sshll.u32 [#allocation5], 4
          %s177 = int_to_ptr.vmem [resolvable:$true] %s176
          %182 = dma.hbm_to_vmem [thread:$0]  %s175, 1600, %s177, [#allocation6], 64, 64, 4
        $region16: #{tpu_custom_call.1} parent=11 // pred_fallthru
          _
        // Predicated region
        $region17: #{tpu_custom_call.1} parent=11 // pred_check
          %p183 = pneg %p86
        $region18: #{tpu_custom_call.1} parent=11 // pred_check_branch
          %185 = sbr.rel (%p183) target = $region20
        $region19: #{tpu_custom_call.1} parent=11 // pred_region
          _
        $region20: #{tpu_custom_call.1} parent=11 // pred_fallthru
          _
        // Predicated region
        $region21: #{tpu_custom_call.1} parent=11 // pred_check
          %p186 = pneg %p107
        $region22: #{tpu_custom_call.1} parent=11 // pred_check_branch
          %188 = sbr.rel (%p186) target = $region24
        $region23: #{tpu_custom_call.1} parent=11 // pred_region
          _
        $region24: #{tpu_custom_call.1} parent=11 // pred_fallthru
          _
        // Predicated region
        $region25: #{tpu_custom_call.1} parent=11 // pred_check
          %p189 = pneg %p128
        $region26: #{tpu_custom_call.1} parent=11 // pred_check_branch
          %191 = sbr.rel (%p189) target = $region28
        $region27: #{tpu_custom_call.1} parent=11 // pred_region
          _
        $region28: #{tpu_custom_call.1} parent=11 // pred_fallthru
          _
      $region12: #{tpu_custom_call.1} parent=5 // pred_fallthru
        _
      %p192 = scmp.lt.s32.totalorder %s18, 2
      // Predicated region
      $region29: #{tpu_custom_call.1} parent=5 // pred_check
        %p193 = pneg %p192
      $region30: #{tpu_custom_call.1} parent=5 // pred_check_branch
        %195 = sbr.rel (%p193) target = $region32
      $region31: #{tpu_custom_call.1} parent=5 // pred_region
        // Predicated region
        $region33: #{tpu_custom_call.1} parent=31 // pred_check
          %p196 = pneg %p38
        $region34: #{tpu_custom_call.1} parent=31 // pred_check_branch
          %198 = sbr.rel (%p196) target = $region36
        $region35: #{tpu_custom_call.1} parent=31 // pred_region
          %s199 = sand.u32 %s28, 1
          %s200 = scalar_lea.sflag [#allocation3], %s199
          %s201 = sand.u32 %s28, 1
          %s202 = smul.addr %s201, 16
          %s203 = scalar_lea.vmem [#allocation2], %s202
          %s204 = smul.u32 2, %s18
          %206 = vsyncadd %s200, 0
          %s207 = smul.addr %s204, 2
          %s208 = smul.addr %s207, 4
          %s209 = scalar_lea.hbm %s0, %s208
          %s210 = sshll.u32 %s209, 4
          %s211 = int_to_ptr.hbm [resolvable:$true] %s210
          %s212 = sshll.u32 %s203, 4
          %s213 = int_to_ptr.vmem [resolvable:$true] %s212
          %218 = dma.hbm_to_vmem [thread:$0]  %s211, 256, %s213, %s200, 128, 128, 8
        $region36: #{tpu_custom_call.1} parent=31 // pred_fallthru
          _
      $region32: #{tpu_custom_call.1} parent=5 // pred_fallthru
        _
      %p219 = scmp.le.s32.totalorder 1, %s18
      %p220 = scmp.lt.s32.totalorder %s18, 3
      %p221 = pnand %p219, %p220
      %p222 = pneg %p221
      // Predicated region
      $region37: #{tpu_custom_call.1} parent=5 // pred_check
        _
      $region38: #{tpu_custom_call.1} parent=5 // pred_check_branch
        %224 = sbr.rel (%p221) target = $region40
      $region39: #{tpu_custom_call.1} parent=5 // pred_region
        %s225 = ssub.s32 %s18, 1
        %s226 = sand.u32 %s31, 1
        %s227 = scalar_lea.sflag [#allocation3], %s226
        %s228 = sand.u32 %s31, 1
        %s229 = smul.addr %s228, 16
        %s230 = scalar_lea.vmem [#allocation2], %s229
        // Predicated region
        $region41: #{tpu_custom_call.1} parent=39 // pred_check
          %p231 = pneg %p44
        $region42: #{tpu_custom_call.1} parent=39 // pred_check_branch
          %233 = sbr.rel (%p231) target = $region44
        $region43: #{tpu_custom_call.1} parent=39 // pred_region
          %235 = dma.done %s227, 256
        $region44: #{tpu_custom_call.1} parent=39 // pred_fallthru
          _
        // Predicated region
        $region45: #{tpu_custom_call.1} parent=39 // pred_check
          %p236 = pneg %p65
        $region46: #{tpu_custom_call.1} parent=39 // pred_check_branch
          %238 = sbr.rel (%p236) target = $region48
        $region47: #{tpu_custom_call.1} parent=39 // pred_region
          %240 = dma.done [#allocation6], 1600
        $region48: #{tpu_custom_call.1} parent=39 // pred_fallthru
          _
        %s241 = sand.u32 %s31, 1
        %s242 = scalar_lea.sflag [#allocation3], %s241
        %s243 = sand.u32 %s31, 1
        %s244 = smul.addr %s243, 16
        %s245 = scalar_lea.vmem [#allocation2], %s244
        %p246 = pneg %p44
        %p247 = pneg %p41
        %p248 = pneg %p65
        %p249 = pneg %p62
        %p250 = pneg %p86
        %p251 = pneg %p83
        %p252 = pneg %p107
        %p253 = pneg %p104
        %p254 = pneg %p128
        %p255 = pneg %p125
        %p256 = pneg %p154
        %p257 = pneg %p151
        %s258 = sand.u32 %s141, 1
        %s259 = scalar_lea.sflag [#allocation4], %s258
        %s260 = sand.u32 %s141, 1
        %s261 = smul.addr %s260, 16
        %s262 = scalar_lea.vmem [#allocation7], %s261
        %s263 = smul.u32 2, %s23
        %s264 = smul.u32 2, %s23
        %v266 = vld [vmem:[%s230] sm:$0xff]
        %v267 = vld [vmem:[%s230 + $0x8] sm:$0xff]
        %v268 = vld [vmem:[#allocation5] sm:$0xf]
        %v269 = vld [vmem:[#allocation5 + $0x4] sm:$0xf]
        %v270 = vld [vmem:[#allocation5 + $0x8] sm:$0xf]
        %v271 = vld [vmem:[#allocation5 + $0xc] sm:$0xf]
        %v272 = vld [vmem:[#allocation5 + $0x10] sm:$0xf]
        %v273 = vld [vmem:[#allocation5 + $0x14] sm:$0xf]
        %v274 = vld [vmem:[#allocation5 + $0x18] sm:$0xf]
        %v275 = vld [vmem:[#allocation5 + $0x1c] sm:$0xf]
        %v276 = vld [vmem:[#allocation5 + $0x20] sm:$0xf]
        %v277 = vld [vmem:[#allocation5 + $0x24] sm:$0xf]
        %v278 = vld [vmem:[#allocation5 + $0x28] sm:$0xf]
        %v279 = vld [vmem:[#allocation5 + $0x2c] sm:$0xf]
        %v280 = vld [vmem:[#allocation5 + $0x30] sm:$0xf]
        %v281 = vld [vmem:[#allocation5 + $0x34] sm:$0xf]
        %v282 = vld [vmem:[#allocation5 + $0x38] sm:$0xf]
        %v283 = vld [vmem:[#allocation5 + $0x3c] sm:$0xf]
        %v284 = vld [vmem:[#allocation5 + $0x40] sm:$0xf]
        %v285 = vld [vmem:[#allocation5 + $0x44] sm:$0xf]
        %v286 = vld [vmem:[#allocation5 + $0x48] sm:$0xf]
        %v287 = vld [vmem:[#allocation5 + $0x4c] sm:$0xf]
        %v288 = vld [vmem:[#allocation5 + $0x50] sm:$0xf]
        %v289 = vld [vmem:[#allocation5 + $0x54] sm:$0xf]
        %v290 = vld [vmem:[#allocation5 + $0x58] sm:$0xf]
        %v291 = vld [vmem:[#allocation5 + $0x5c] sm:$0xf]
        %v292 = vld [vmem:[#allocation5 + $0x60] sm:$0x3]
        %v293 = vld [vmem:[%s2] sm:$0x1]
        %v295 = vperm.slane %v293, 0
        %v299 = vunpack.c.l.b16 %v266
        %v300 = vunpack.c.h.b16 %v266
        %v301 = vunpack.c.l.b16 %v267
        %v302 = vunpack.c.h.b16 %v267
        %v303 = vpack.c.b16 %v301, %v299
        %v304 = vpack.c.b16 %v302, %v300
        %v331 = vunpack.c.l.b16 %v268
        %v332 = vunpack.c.l.b16 %v269
        %v333 = vunpack.c.l.b16 %v270
        %v334 = vunpack.c.l.b16 %v271
        %v335 = vunpack.c.l.b16 %v272
        %v336 = vunpack.c.l.b16 %v273
        %v337 = vunpack.c.l.b16 %v274
        %v338 = vunpack.c.l.b16 %v275
        %v339 = vunpack.c.l.b16 %v276
        %v340 = vunpack.c.l.b16 %v277
        %v341 = vunpack.c.l.b16 %v278
        %v342 = vunpack.c.l.b16 %v279
        %v343 = vunpack.c.l.b16 %v280
        %v344 = vunpack.c.l.b16 %v281
        %v345 = vunpack.c.l.b16 %v282
        %v346 = vunpack.c.l.b16 %v283
        %v347 = vunpack.c.l.b16 %v284
        %v348 = vunpack.c.l.b16 %v285
        %v349 = vunpack.c.l.b16 %v286
        %v350 = vunpack.c.l.b16 %v287
        %v351 = vunpack.c.l.b16 %v288
        %v352 = vunpack.c.l.b16 %v289
        %v353 = vunpack.c.l.b16 %v290
        %v354 = vunpack.c.l.b16 %v291
        %v355 = vunpack.c.l.b16 %v292
        %v356 = vpack.c.b16 %v332, %v331
        %v357 = vpack.c.b16 %v334, %v333
        %v358 = vpack.c.b16 %v336, %v335
        %v359 = vpack.c.b16 %v338, %v337
        %v360 = vpack.c.b16 %v340, %v339
        %v361 = vpack.c.b16 %v342, %v341
        %v362 = vpack.c.b16 %v344, %v343
        %v363 = vpack.c.b16 %v346, %v345
        %v364 = vpack.c.b16 %v348, %v347
        %v365 = vpack.c.b16 %v350, %v349
        %v366 = vpack.c.b16 %v352, %v351
        %v367 = vpack.c.b16 %v354, %v353
        %v368 = vpack.c.b16 %v355, %v355
        %vm381 = vcmask 556032
        %v383 = vsel %vm381, %v304, 0
        %vm385 = vcmask 1041408
        %v387 = vsel %vm385, %v368, 0
        %389 = vmatpush.bf16.msra.mxu0 %v363
        %390 = vmatpush.bf16.msra.mxu0 %v362
        %391 = vmatpush.bf16.msra.mxu0 %v361
        %392 = vmatpush.bf16.msra.mxu0 %v360
        %393 = vmatpush.bf16.msra.mxu0 %v359
        %394 = vmatpush.bf16.msra.mxu0 %v358
        %395 = vmatpush.bf16.msra.mxu0 %v357
        %396 = vmatpush.bf16.msra.mxu0 %v356
        %397 = vmatmul.bf16.gmra.mxu0 %v303
        %v398 = vpop.f32.mrf.mxu0
        %v399 = vadd.f32 %v295, %v398
        %v400 = vpop.f32.mrf.mxu0
        %v401 = vadd.f32 %v295, %v400
        %402 = vdwg.mxu0
        %403 = vmatpush.bf16.msra.mxu0 0
        %404 = vmatpush.bf16.msra.mxu0 0
        %405 = vmatpush.bf16.msra.mxu0 0
        %406 = vmatpush.bf16.msra.mxu0 %v387
        %407 = vmatpush.bf16.msra.mxu0 %v367
        %408 = vmatpush.bf16.msra.mxu0 %v366
        %409 = vmatpush.bf16.msra.mxu0 %v365
        %410 = vmatpush.bf16.msra.mxu0 %v364
        %411 = vmatmul.bf16.gmra.mxu0 %v383
        %v412 = vpop.f32.mrf.mxu0
        %v413 = vadd.f32 %v399, %v412
        %v414 = vpop.f32.mrf.mxu0
        %v415 = vadd.f32 %v401, %v414
        %416 = vdwg.mxu0
        %417 = vadd.xlane.f32.xlu0 %v413
        %v418 = vpop.xlane.xlu0 %417
        %419 = vadd.xlane.f32.xlu0 %v415
        %v420 = vpop.xlane.xlu0 %419
        %v421 = vmul.f32 %v418, 0.03125
        %v422 = vmul.f32 %v420, 0.03125
        %v423 = vlaneseq
        %v424 = vand.u32 %v423, 127
        %vm425 = vcmp.lt.s32.totalorder %v424, 32
        %v426 = vsub.f32 %v413, %v421
        %v427 = vsub.f32 %v415, %v422
        %v428 = vsel %vm425, %v426, 0.0
        %v429 = vsel %vm425, %v427, 0.0
        %v430 = vmul.f32 %v428, %v428
        %v431 = vmul.f32 %v429, %v429
        %432 = vadd.xlane.f32.xlu0 %v430
        %v433 = vpop.xlane.xlu0 %432
        %434 = vadd.xlane.f32.xlu0 %v431
        %v435 = vpop.xlane.xlu0 %434
        %v436 = vmul.f32 %v433, 0.03125
        %v437 = vmul.f32 %v435, 0.03125
        %v438 = vadd.f32 %v436, 1e-05
        %v439 = vadd.f32 %v437, 1e-05
        %v440 = vrsqrt.pop %v438
        %v441 = vmul.f32 %v440, %v438
        %v442 = vmul.f32 %v441, %v440
        %v443 = vmul.f32 0.5, %v442
        %v444 = vsub.f32 1.5, %v443
        %v445 = vmul.f32 %v440, %v444
        %vm446 = vweird.f32 %v438
        %vm447 = vweird.f32 %v440
        %vm448 = vmor %vm446, %vm447
        %v449 = vsel %vm448, %v440, %v445
        %v450 = vrsqrt.pop %v439
        %v451 = vmul.f32 %v450, %v439
        %v452 = vmul.f32 %v451, %v450
        %v453 = vmul.f32 0.5, %v452
        %v454 = vsub.f32 1.5, %v453
        %v455 = vmul.f32 %v450, %v454
        %vm456 = vweird.f32 %v439
        %vm457 = vweird.f32 %v450
        %vm458 = vmor %vm456, %vm457
        %v459 = vsel %vm458, %v450, %v455
        %v460 = vmul.f32 %v428, %v449
        %v461 = vmul.f32 %v429, %v459
        %v462 = vld [vmem:[%s3] sm:$0x1]
        %v464 = vperm.slane %v462, 0
        %v466 = vmul.f32 %v460, %v464
        %v467 = vmul.f32 %v461, %v464
        %v468 = vld [vmem:[%s4] sm:$0x1]
        %v470 = vperm.slane %v468, 0
        %v472 = vadd.f32 %v466, %v470
        %v473 = vadd.f32 %v467, %v470
        %474 = vst [vmem:[%s262] sm:$0xff] %v472
        %475 = vst [vmem:[%s262 + $0x8] sm:$0xff] %v473
        %s476 = sand.u32 %s141, 1
        %s477 = scalar_lea.sflag [#allocation4], %s476
        %s478 = sand.u32 %s141, 1
        %s479 = smul.addr %s478, 16
        %s480 = scalar_lea.vmem [#allocation7], %s479
        // Predicated region
        $region49: #{tpu_custom_call.1} parent=39 // pred_check
          %p481 = pneg %p151
        $region50: #{tpu_custom_call.1} parent=39 // pred_check_branch
          %483 = sbr.rel (%p481) target = $region52
        $region51: #{tpu_custom_call.1} parent=39 // pred_region
          %s484 = smul.u32 2, %s23
          %486 = vsyncadd %s477, 0
          %s487 = smul.addr %s484, 8
          %s488 = scalar_lea.hbm %s5, %s487
          %s489 = sshll.u32 %s480, 4
          %s490 = int_to_ptr.vmem [resolvable:$true] %s489
          %s491 = sshll.u32 %s488, 4
          %s492 = int_to_ptr.hbm [resolvable:$true] %s491
          %497 = dma.vmem_to_hbm [thread:$0]  %s490, 256, %s492, %s477, 128, 128, 8
        $region52: #{tpu_custom_call.1} parent=39 // pred_fallthru
          _
      $region40: #{tpu_custom_call.1} parent=5 // pred_fallthru
        _
      %p498 = scmp.le.s32.totalorder 2, %s18
      // Predicated region
      $region53: #{tpu_custom_call.1} parent=5 // pred_check
        %p499 = pneg %p498
      $region54: #{tpu_custom_call.1} parent=5 // pred_check_branch
        %501 = sbr.rel (%p499) target = $region56
      $region55: #{tpu_custom_call.1} parent=5 // pred_region
        %s502 = ssub.s32 %s18, 2
        // Predicated region
        $region57: #{tpu_custom_call.1} parent=55 // pred_check
          %p503 = pneg %p157
        $region58: #{tpu_custom_call.1} parent=55 // pred_check_branch
          %505 = sbr.rel (%p503) target = $region60
        $region59: #{tpu_custom_call.1} parent=55 // pred_region
          %s506 = sand.u32 %s142, 1
          %s507 = scalar_lea.sflag [#allocation4], %s506
          %s508 = sand.u32 %s142, 1
          %s509 = smul.addr %s508, 16
          %s510 = scalar_lea.vmem [#allocation7], %s509
          %512 = dma.done %s507, 256
        $region60: #{tpu_custom_call.1} parent=55 // pred_fallthru
          _
      $region56: #{tpu_custom_call.1} parent=5 // pred_fallthru
        _
    $region6: #{tpu_custom_call.1} parent=1 // loop_footer
      %s22 = sadd.s32 1, %s18
    $region7: #{tpu_custom_call.1} parent=1 // loop_footer_branch
      %17 = sbr.rel target = $region3
    $region8: #{tpu_custom_call.1} parent=1 // loop_exit
      _
    %513 = vsyncpa [#allocation3], 1
    %s514 = scalar_lea.sflag [#allocation3], 1
    %515 = vsyncpa %s514, 1
    %516 = vsyncpa [#allocation6], 1
    %517 = vsyncpa [#allocation4], 1
    %s518 = scalar_lea.sflag [#allocation4], 1
    %519 = vsyncpa %s518, 1

// kernel: tpu_custom_call.1
$region0: #{tpu_custom_call.1}
  #allocation0 [shape = 'u32[]', space=smem, size = 0x4, offset = 0x4, fixed_abs, tag = 'smem constant byte address 0x4 - core index']
  #allocation1 [shape = 'u32[72,128]{1,0:T(1,128)}', space=vmem, size = 0x9000, scoped, tag = 'internal scratch']
  %s0 = inlined_call_operand.hbm [shape: bf16[32,196], index: 0, kind: input, shape index: {}]
  %s1 = inlined_call_operand.hbm [shape: bf16[196,128], index: 1, kind: input, shape index: {}]
  %s2 = inlined_call_operand.vmem [shape: f32[1,128], index: 2, kind: input, shape index: {}]
  %s3 = inlined_call_operand.vmem [shape: f32[1,128], index: 3, kind: input, shape index: {}]
  %s4 = inlined_call_operand.vmem [shape: f32[1,128], index: 4, kind: input, shape index: {}]
  %s5 = inlined_call_operand.hbm [shape: f32[32,128], index: 5, kind: output, shape index: {}]
  %s6 = sld [smem:[#allocation0]]
  $region61: #{tpu_custom_call.1} parent=0
    _
  %s8 = ssub.s32 1, %s6
  %s9 = scalar_select 0, %s8, %s6
  $region1: #{tpu_custom_call.1} parent=0
    #allocation2 [shape = 'u8[16384]{0}', space=vmem, size = 0x4000, scoped, tag = 'input window, operand 0']
    #allocation3 [shape = 's32[2]{0}', space=sflag, size = 0x8, scoped, tag = 'scoped memory for tpu_custom_call.1']
    #allocation4 [shape = 's32[2]{0}', space=sflag, size = 0x8, scoped, tag = 'scoped memory for tpu_custom_call.1']
    #allocation5 [shape = 'u8[51200]{0}', space=vmem, size = 0xc800, scoped, tag = 'input window, operand 1, single buffered']
    #allocation6 [shape = 's32[1]{0}', space=sflag, size = 0x4, scoped, tag = 'scoped memory for tpu_custom_call.1']
    #allocation7 [shape = 'u8[16384]{0}', space=vmem, size = 0x4000, scoped, tag = 'output window, operand 0']
    %10 = vsyncpa [#allocation3], 0
    %s11 = scalar_lea.sflag [#allocation3], 1
    %12 = vsyncpa %s11, 0
    %13 = vsyncpa [#allocation6], 0
    %14 = vsyncpa [#allocation4], 0
    %s15 = scalar_lea.sflag [#allocation4], 1
    %16 = vsyncpa %s15, 0
    loop: start=0, step=1, limit=4
    $region2: #{tpu_custom_call.1} parent=1 // loop_pre_header
      _
    $region3: #{tpu_custom_call.1} parent=1 // loop_header
      %s18 = sphi 0, %s22
      %p19 = scmp.ge.s32.totalorder %s18, 4
      %s28 = sphi 0, %s30
      %s31 = sphi 0, %s28
      %s32 = sphi 0, %s31
      %s48 = sphi 0, %s32
      %s52 = sphi 0, %s52
      %s54 = sphi 0, %s52
      %s55 = sphi 0, %s54
      %s69 = sphi 0, %s55
      %s73 = sphi 0, %s73
      %s75 = sphi 0, %s73
      %s76 = sphi 0, %s75
      %s90 = sphi 0, %s76
      %s94 = sphi 0, %s94
      %s96 = sphi 0, %s94
      %s97 = sphi 0, %s96
      %s111 = sphi 0, %s97
      %s115 = sphi 0, %s115
      %s117 = sphi 0, %s115
      %s118 = sphi 0, %s117
      %s132 = sphi 0, %s118
      %s138 = sphi 0, %s140
      %s141 = sphi 0, %s138
      %s142 = sphi 0, %s141
      %s158 = sphi 0, %s142
    $region4: #{tpu_custom_call.1} parent=1 // loop_header_branch
      %21 = sbr.rel (%p19) target = $region8
    $region5: #{tpu_custom_call.1} parent=1 // loop_body
      %s23 = ssub.s32 %s18, 1
      %s24 = ssub.s32 %s18, 2
      %s25 = sadd.s32 %s18, 1
      %s26 = ssub.s32 %s18, %s25
      %p27 = scmp.eq.s32.totalorder %s26, 0
      %s29 = sadd.s32 %s28, 1
      %s30 = scalar_select %p27, %s28, %s29
      %p33 = pneg %p27
      %p34 = scmp.eq.s32.totalorder %s18, 1
      %p35 = por %p33, %p34
      %p36 = scmp.ne.s32.totalorder %s28, %s31
      %p37 = scmp.eq.s32.totalorder %s18, 0
      %p38 = por %p36, %p37
      %p39 = scmp.ne.s32.totalorder %s28, %s31
      %p40 = scmp.eq.s32.totalorder %s23, 1
      %p41 = por %p39, %p40
      %p42 = scmp.ne.s32.totalorder %s31, %s32
      %p43 = scmp.eq.s32.totalorder %s23, 0
      %p44 = por %p42, %p43
      %p45 = scmp.ne.s32.totalorder %s31, %s32
      %p46 = scmp.eq.s32.totalorder %s24, 1
      %p47 = por %p45, %p46
      %p49 = scmp.ne.s32.totalorder %s32, %s48
      %p50 = scmp.eq.s32.totalorder %s24, 0
      %p51 = por %p49, %p50
      %s53 = sadd.s32 %s52, 1
      %p56 = scmp.eq.s32.totalorder %s18, 1
      %p57 = scmp.ne.s32.totalorder %s52, %s54
      %p58 = scmp.eq.s32.totalorder %s18, 0
      %p59 = por %p57, %p58
      %p60 = scmp.ne.s32.totalorder %s52, %s54
      %p61 = scmp.eq.s32.totalorder %s23, 1
      %p62 = por %p60, %p61
      %p63 = scmp.ne.s32.totalorder %s54, %s55
      %p64 = scmp.eq.s32.totalorder %s23, 0
      %p65 = por %p63, %p64
      %p66 = scmp.ne.s32.totalorder %s54, %s55
      %p67 = scmp.eq.s32.totalorder %s24, 1
      %p68 = por %p66, %p67
      %p70 = scmp.ne.s32.totalorder %s55, %s69
      %p71 = scmp.eq.s32.totalorder %s24, 0
      %p72 = por %p70, %p71
      %s74 = sadd.s32 %s73, 1
      %p77 = scmp.eq.s32.totalorder %s18, 1
      %p78 = scmp.ne.s32.totalorder %s73, %s75
      %p79 = scmp.eq.s32.totalorder %s18, 0
      %p80 = por %p78, %p79
      %p81 = scmp.ne.s32.totalorder %s73, %s75
      %p82 = scmp.eq.s32.totalorder %s23, 1
      %p83 = por %p81, %p82
      %p84 = scmp.ne.s32.totalorder %s75, %s76
      %p85 = scmp.eq.s32.totalorder %s23, 0
      %p86 = por %p84, %p85
      %p87 = scmp.ne.s32.totalorder %s75, %s76
      %p88 = scmp.eq.s32.totalorder %s24, 1
      %p89 = por %p87, %p88
      %p91 = scmp.ne.s32.totalorder %s76, %s90
      %p92 = scmp.eq.s32.totalorder %s24, 0
      %p93 = por %p91, %p92
      %s95 = sadd.s32 %s94, 1
      %p98 = scmp.eq.s32.totalorder %s18, 1
      %p99 = scmp.ne.s32.totalorder %s94, %s96
      %p100 = scmp.eq.s32.totalorder %s18, 0
      %p101 = por %p99, %p100
      %p102 = scmp.ne.s32.totalorder %s94, %s96
      %p103 = scmp.eq.s32.totalorder %s23, 1
      %p104 = por %p102, %p103
      %p105 = scmp.ne.s32.totalorder %s96, %s97
      %p106 = scmp.eq.s32.totalorder %s23, 0
      %p107 = por %p105, %p106
      %p108 = scmp.ne.s32.totalorder %s96, %s97
      %p109 = scmp.eq.s32.totalorder %s24, 1
      %p110 = por %p108, %p109
      %p112 = scmp.ne.s32.totalorder %s97, %s111
      %p113 = scmp.eq.s32.totalorder %s24, 0
      %p114 = por %p112, %p113
      %s116 = sadd.s32 %s115, 1
      %p119 = scmp.eq.s32.totalorder %s18, 1
      %p120 = scmp.ne.s32.totalorder %s115, %s117
      %p121 = scmp.eq.s32.totalorder %s18, 0
      %p122 = por %p120, %p121
      %p123 = scmp.ne.s32.totalorder %s115, %s117
      %p124 = scmp.eq.s32.totalorder %s23, 1
      %p125 = por %p123, %p124
      %p126 = scmp.ne.s32.totalorder %s117, %s118
      %p127 = scmp.eq.s32.totalorder %s23, 0
      %p128 = por %p126, %p127
      %p129 = scmp.ne.s32.totalorder %s117, %s118
      %p130 = scmp.eq.s32.totalorder %s24, 1
      %p131 = por %p129, %p130
      %p133 = scmp.ne.s32.totalorder %s118, %s132
      %p134 = scmp.eq.s32.totalorder %s24, 0
      %p135 = por %p133, %p134
      %s136 = ssub.s32 %s18, %s25
      %p137 = scmp.eq.s32.totalorder %s136, 0
      %s139 = sadd.s32 %s138, 1
      %s140 = scalar_select %p137, %s138, %s139
      %p143 = pneg %p137
      %p144 = scmp.eq.s32.totalorder %s18, 1
      %p145 = por %p143, %p144
      %p146 = scmp.ne.s32.totalorder %s138, %s141
      %p147 = scmp.eq.s32.totalorder %s18, 0
      %p148 = por %p146, %p147
      %p149 = scmp.ne.s32.totalorder %s138, %s141
      %p150 = scmp.eq.s32.totalorder %s23, 1
      %p151 = por %p149, %p150
      %p152 = scmp.ne.s32.totalorder %s141, %s142
      %p153 = scmp.eq.s32.totalorder %s23, 0
      %p154 = por %p152, %p153
      %p155 = scmp.ne.s32.totalorder %s141, %s142
      %p156 = scmp.eq.s32.totalorder %s24, 1
      %p157 = por %p155, %p156
      %p159 = scmp.ne.s32.totalorder %s142, %s158
      %p160 = scmp.eq.s32.totalorder %s24, 0
      %p161 = por %p159, %p160
      %p162 = scmp.le.s32.totalorder 1, %s18
      %p163 = scmp.lt.s32.totalorder %s18, 3
      %p164 = pnand %p162, %p163
      %p165 = pneg %p164
      // Predicated region
      $region9: #{tpu_custom_call.1} parent=5 // pred_check
        _
      $region10: #{tpu_custom_call.1} parent=5 // pred_check_branch
        %167 = sbr.rel (%p164) target = $region12
      $region11: #{tpu_custom_call.1} parent=5 // pred_region
        %s168 = ssub.s32 %s18, 1
        // Predicated region
        $region13: #{tpu_custom_call.1} parent=11 // pred_check
          %p169 = pneg %p65
        $region14: #{tpu_custom_call.1} parent=11 // pred_check_branch
          %171 = sbr.rel (%p169) target = $region16
        $region15: #{tpu_custom_call.1} parent=11 // pred_region
          %173 = vsyncadd [#allocation6], 0
          %s174 = sshll.u32 %s1, 4
          %s175 = int_to_ptr.hbm [resolvable:$true] %s174
          %s176 = sshll.u32 [#allocation5], 4
          %s177 = int_to_ptr.vmem [resolvable:$true] %s176
          %182 = dma.hbm_to_vmem [thread:$0]  %s175, 1600, %s177, [#allocation6], 64, 64, 4
        $region16: #{tpu_custom_call.1} parent=11 // pred_fallthru
          _
        // Predicated region
        $region17: #{tpu_custom_call.1} parent=11 // pred_check
          %p183 = pneg %p86
        $region18: #{tpu_custom_call.1} parent=11 // pred_check_branch
          %185 = sbr.rel (%p183) target = $region20
        $region19: #{tpu_custom_call.1} parent=11 // pred_region
          _
        $region20: #{tpu_custom_call.1} parent=11 // pred_fallthru
          _
        // Predicated region
        $region21: #{tpu_custom_call.1} parent=11 // pred_check
          %p186 = pneg %p107
        $region22: #{tpu_custom_call.1} parent=11 // pred_check_branch
          %188 = sbr.rel (%p186) target = $region24
        $region23: #{tpu_custom_call.1} parent=11 // pred_region
          _
        $region24: #{tpu_custom_call.1} parent=11 // pred_fallthru
          _
        // Predicated region
        $region25: #{tpu_custom_call.1} parent=11 // pred_check
          %p189 = pneg %p128
        $region26: #{tpu_custom_call.1} parent=11 // pred_check_branch
          %191 = sbr.rel (%p189) target = $region28
        $region27: #{tpu_custom_call.1} parent=11 // pred_region
          _
        $region28: #{tpu_custom_call.1} parent=11 // pred_fallthru
          _
      $region12: #{tpu_custom_call.1} parent=5 // pred_fallthru
        _
      %p192 = scmp.lt.s32.totalorder %s18, 2
      // Predicated region
      $region29: #{tpu_custom_call.1} parent=5 // pred_check
        %p193 = pneg %p192
      $region30: #{tpu_custom_call.1} parent=5 // pred_check_branch
        %195 = sbr.rel (%p193) target = $region32
      $region31: #{tpu_custom_call.1} parent=5 // pred_region
        // Predicated region
        $region33: #{tpu_custom_call.1} parent=31 // pred_check
          %p196 = pneg %p38
        $region34: #{tpu_custom_call.1} parent=31 // pred_check_branch
          %198 = sbr.rel (%p196) target = $region36
        $region35: #{tpu_custom_call.1} parent=31 // pred_region
          %s199 = sand.u32 %s28, 1
          %s200 = scalar_lea.sflag [#allocation3], %s199
          %s201 = sand.u32 %s28, 1
          %s202 = smul.addr %s201, 16
          %s203 = scalar_lea.vmem [#allocation2], %s202
          %s204 = smul.u32 2, %s18
          %206 = vsyncadd %s200, 0
          %s207 = smul.addr %s204, 2
          %s208 = smul.addr %s207, 4
          %s209 = scalar_lea.hbm %s0, %s208
          %s210 = sshll.u32 %s209, 4
          %s211 = int_to_ptr.hbm [resolvable:$true] %s210
          %s212 = sshll.u32 %s203, 4
          %s213 = int_to_ptr.vmem [resolvable:$true] %s212
          %218 = dma.hbm_to_vmem [thread:$0]  %s211, 256, %s213, %s200, 128, 128, 8
        $region36: #{tpu_custom_call.1} parent=31 // pred_fallthru
          _
      $region32: #{tpu_custom_call.1} parent=5 // pred_fallthru
        _
      %p219 = scmp.le.s32.totalorder 1, %s18
      %p220 = scmp.lt.s32.totalorder %s18, 3
      %p221 = pnand %p219, %p220
      %p222 = pneg %p221
      // Predicated region
      $region37: #{tpu_custom_call.1} parent=5 // pred_check
        _
      $region38: #{tpu_custom_call.1} parent=5 // pred_check_branch
        %224 = sbr.rel (%p221) target = $region40
      $region39: #{tpu_custom_call.1} parent=5 // pred_region
        %s225 = ssub.s32 %s18, 1
        %s226 = sand.u32 %s31, 1
        %s227 = scalar_lea.sflag [#allocation3], %s226
        %s228 = sand.u32 %s31, 1
        %s229 = smul.addr %s228, 16
        %s230 = scalar_lea.vmem [#allocation2], %s229
        // Predicated region
        $region41: #{tpu_custom_call.1} parent=39 // pred_check
          %p231 = pneg %p44
        $region42: #{tpu_custom_call.1} parent=39 // pred_check_branch
          %233 = sbr.rel (%p231) target = $region44
        $region43: #{tpu_custom_call.1} parent=39 // pred_region
          %235 = dma.done %s227, 256
        $region44: #{tpu_custom_call.1} parent=39 // pred_fallthru
          _
        // Predicated region
        $region45: #{tpu_custom_call.1} parent=39 // pred_check
          %p236 = pneg %p65
        $region46: #{tpu_custom_call.1} parent=39 // pred_check_branch
          %238 = sbr.rel (%p236) target = $region48
        $region47: #{tpu_custom_call.1} parent=39 // pred_region
          %240 = dma.done [#allocation6], 1600
        $region48: #{tpu_custom_call.1} parent=39 // pred_fallthru
          _
        %s241 = sand.u32 %s31, 1
        %s242 = scalar_lea.sflag [#allocation3], %s241
        %s243 = sand.u32 %s31, 1
        %s244 = smul.addr %s243, 16
        %s245 = scalar_lea.vmem [#allocation2], %s244
        %p246 = pneg %p44
        %p247 = pneg %p41
        %p248 = pneg %p65
        %p249 = pneg %p62
        %p250 = pneg %p86
        %p251 = pneg %p83
        %p252 = pneg %p107
        %p253 = pneg %p104
        %p254 = pneg %p128
        %p255 = pneg %p125
        %p256 = pneg %p154
        %p257 = pneg %p151
        %s258 = sand.u32 %s141, 1
        %s259 = scalar_lea.sflag [#allocation4], %s258
        %s260 = sand.u32 %s141, 1
        %s261 = smul.addr %s260, 16
        %s262 = scalar_lea.vmem [#allocation7], %s261
        %s263 = smul.u32 2, %s23
        %s264 = smul.u32 2, %s23
        %v266 = vld [vmem:[%s230] sm:$0xff]
        %v267 = vld [vmem:[%s230 + $0x8] sm:$0xff]
        %v268 = vld [vmem:[#allocation5] sm:$0xf]
        %v269 = vld [vmem:[#allocation5 + $0x4] sm:$0xf]
        %v270 = vld [vmem:[#allocation5 + $0x8] sm:$0xf]
        %v271 = vld [vmem:[#allocation5 + $0xc] sm:$0xf]
        %v272 = vld [vmem:[#allocation5 + $0x10] sm:$0xf]
        %v273 = vld [vmem:[#allocation5 + $0x14] sm:$0xf]
        %v274 = vld [vmem:[#allocation5 + $0x18] sm:$0xf]
        %v275 = vld [vmem:[#allocation5 + $0x1c] sm:$0xf]
        %v276 = vld [vmem:[#allocation5 + $0x20] sm:$0xf]
        %v277 = vld [vmem:[#allocation5 + $0x24] sm:$0xf]
        %v278 = vld [vmem:[#allocation5 + $0x28] sm:$0xf]
        %v279 = vld [vmem:[#allocation5 + $0x2c] sm:$0xf]
        %v280 = vld [vmem:[#allocation5 + $0x30] sm:$0xf]
        %v281 = vld [vmem:[#allocation5 + $0x34] sm:$0xf]
        %v282 = vld [vmem:[#allocation5 + $0x38] sm:$0xf]
        %v283 = vld [vmem:[#allocation5 + $0x3c] sm:$0xf]
        %v284 = vld [vmem:[#allocation5 + $0x40] sm:$0xf]
        %v285 = vld [vmem:[#allocation5 + $0x44] sm:$0xf]
        %v286 = vld [vmem:[#allocation5 + $0x48] sm:$0xf]
        %v287 = vld [vmem:[#allocation5 + $0x4c] sm:$0xf]
        %v288 = vld [vmem:[#allocation5 + $0x50] sm:$0xf]
        %v289 = vld [vmem:[#allocation5 + $0x54] sm:$0xf]
        %v290 = vld [vmem:[#allocation5 + $0x58] sm:$0xf]
        %v291 = vld [vmem:[#allocation5 + $0x5c] sm:$0xf]
        %v292 = vld [vmem:[#allocation5 + $0x60] sm:$0x3]
        %v293 = vld [vmem:[%s2] sm:$0x1]
        %v295 = vperm.slane %v293, 0
        %v299 = vunpack.c.l.b16 %v266
        %v300 = vunpack.c.h.b16 %v266
        %v301 = vunpack.c.l.b16 %v267
        %v302 = vunpack.c.h.b16 %v267
        %v303 = vpack.c.b16 %v301, %v299
        %v304 = vpack.c.b16 %v302, %v300
        %v331 = vunpack.c.l.b16 %v268
        %v332 = vunpack.c.l.b16 %v269
        %v333 = vunpack.c.l.b16 %v270
        %v334 = vunpack.c.l.b16 %v271
        %v335 = vunpack.c.l.b16 %v272
        %v336 = vunpack.c.l.b16 %v273
        %v337 = vunpack.c.l.b16 %v274
        %v338 = vunpack.c.l.b16 %v275
        %v339 = vunpack.c.l.b16 %v276
        %v340 = vunpack.c.l.b16 %v277
        %v341 = vunpack.c.l.b16 %v278
        %v342 = vunpack.c.l.b16 %v279
        %v343 = vunpack.c.l.b16 %v280
        %v344 = vunpack.c.l.b16 %v281
        %v345 = vunpack.c.l.b16 %v282
        %v346 = vunpack.c.l.b16 %v283
        %v347 = vunpack.c.l.b16 %v284
        %v348 = vunpack.c.l.b16 %v285
        %v349 = vunpack.c.l.b16 %v286
        %v350 = vunpack.c.l.b16 %v287
        %v351 = vunpack.c.l.b16 %v288
        %v352 = vunpack.c.l.b16 %v289
        %v353 = vunpack.c.l.b16 %v290
        %v354 = vunpack.c.l.b16 %v291
        %v355 = vunpack.c.l.b16 %v292
        %v356 = vpack.c.b16 %v332, %v331
        %v357 = vpack.c.b16 %v334, %v333
        %v358 = vpack.c.b16 %v336, %v335
        %v359 = vpack.c.b16 %v338, %v337
        %v360 = vpack.c.b16 %v340, %v339
        %v361 = vpack.c.b16 %v342, %v341
        %v362 = vpack.c.b16 %v344, %v343
        %v363 = vpack.c.b16 %v346, %v345
        %v364 = vpack.c.b16 %v348, %v347
        %v365 = vpack.c.b16 %v350, %v349
        %v366 = vpack.c.b16 %v352, %v351
        %v367 = vpack.c.b16 %v354, %v353
        %v368 = vpack.c.b16 %v355, %v355
        %vm381 = vcmask 556032
        %v383 = vsel %vm381, %v304, 0
        %vm385 = vcmask 1041408
        %v387 = vsel %vm385, %v368, 0
        %389 = vmatpush.bf16.msra.mxu0 %v363
        %390 = vmatpush.bf16.msra.mxu0 %v362
        %391 = vmatpush.bf16.msra.mxu0 %v361
        %392 = vmatpush.bf16.msra.mxu0 %v360
        %393 = vmatpush.bf16.msra.mxu0 %v359
        %394 = vmatpush.bf16.msra.mxu0 %v358
        %395 = vmatpush.bf16.msra.mxu0 %v357
        %396 = vmatpush.bf16.msra.mxu0 %v356
        %397 = vmatmul.bf16.gmra.mxu0 %v303
        %v398 = vpop.f32.mrf.mxu0
        %v399 = vadd.f32 %v295, %v398
        %v400 = vpop.f32.mrf.mxu0
        %v401 = vadd.f32 %v295, %v400
        %402 = vdwg.mxu0
        %403 = vmatpush.bf16.msra.mxu0 0
        %404 = vmatpush.bf16.msra.mxu0 0
        %405 = vmatpush.bf16.msra.mxu0 0
        %406 = vmatpush.bf16.msra.mxu0 %v387
        %407 = vmatpush.bf16.msra.mxu0 %v367
        %408 = vmatpush.bf16.msra.mxu0 %v366
        %409 = vmatpush.bf16.msra.mxu0 %v365
        %410 = vmatpush.bf16.msra.mxu0 %v364
        %411 = vmatmul.bf16.gmra.mxu0 %v383
        %v412 = vpop.f32.mrf.mxu0
        %v413 = vadd.f32 %v399, %v412
        %v414 = vpop.f32.mrf.mxu0
        %v415 = vadd.f32 %v401, %v414
        %416 = vdwg.mxu0
        %417 = vadd.xlane.f32.xlu0 %v413
        %v418 = vpop.xlane.xlu0 %417
        %419 = vadd.xlane.f32.xlu0 %v415
        %v420 = vpop.xlane.xlu0 %419
        %v421 = vmul.f32 %v418, 0.03125
        %v422 = vmul.f32 %v420, 0.03125
        %v423 = vlaneseq
        %v424 = vand.u32 %v423, 127
        %vm425 = vcmp.lt.s32.totalorder %v424, 32
        %v426 = vsub.f32 %v413, %v421
        %v427 = vsub.f32 %v415, %v422
        %v428 = vsel %vm425, %v426, 0.0
        %v429 = vsel %vm425, %v427, 0.0
        %v430 = vmul.f32 %v428, %v428
        %v431 = vmul.f32 %v429, %v429
        %432 = vadd.xlane.f32.xlu0 %v430
        %v433 = vpop.xlane.xlu0 %432
        %434 = vadd.xlane.f32.xlu0 %v431
        %v435 = vpop.xlane.xlu0 %434
        %v436 = vmul.f32 %v433, 0.03125
        %v437 = vmul.f32 %v435, 0.03125
        %v438 = vadd.f32 %v436, 1e-05
        %v439 = vadd.f32 %v437, 1e-05
        %v440 = vrsqrt.pop %v438
        %v441 = vmul.f32 %v440, %v438
        %v442 = vmul.f32 %v441, %v440
        %v443 = vmul.f32 0.5, %v442
        %v444 = vsub.f32 1.5, %v443
        %v445 = vmul.f32 %v440, %v444
        %vm446 = vweird.f32 %v438
        %vm447 = vweird.f32 %v440
        %vm448 = vmor %vm446, %vm447
        %v449 = vsel %vm448, %v440, %v445
        %v450 = vrsqrt.pop %v439
        %v451 = vmul.f32 %v450, %v439
        %v452 = vmul.f32 %v451, %v450
        %v453 = vmul.f32 0.5, %v452
        %v454 = vsub.f32 1.5, %v453
        %v455 = vmul.f32 %v450, %v454
        %vm456 = vweird.f32 %v439
        %vm457 = vweird.f32 %v450
        %vm458 = vmor %vm456, %vm457
        %v459 = vsel %vm458, %v450, %v455
        %v460 = vmul.f32 %v428, %v449
        %v461 = vmul.f32 %v429, %v459
        %v462 = vld [vmem:[%s3] sm:$0x1]
        %v464 = vperm.slane %v462, 0
        %v466 = vmul.f32 %v460, %v464
        %v467 = vmul.f32 %v461, %v464
        %v468 = vld [vmem:[%s4] sm:$0x1]
        %v470 = vperm.slane %v468, 0
        %v472 = vadd.f32 %v466, %v470
        %v473 = vadd.f32 %v467, %v470
        %474 = vst [vmem:[%s262] sm:$0xff] %v472
        %475 = vst [vmem:[%s262 + $0x8] sm:$0xff] %v473
        %s476 = sand.u32 %s141, 1
        %s477 = scalar_lea.sflag [#allocation4], %s476
        %s478 = sand.u32 %s141, 1
        %s479 = smul.addr %s478, 16
        %s480 = scalar_lea.vmem [#allocation7], %s479
        // Predicated region
        $region49: #{tpu_custom_call.1} parent=39 // pred_check
          %p481 = pneg %p151
        $region50: #{tpu_custom_call.1} parent=39 // pred_check_branch
          %483 = sbr.rel (%p481) target = $region52
        $region51: #{tpu_custom_call.1} parent=39 // pred_region
          %s484 = smul.u32 2, %s23
          %486 = vsyncadd %s477, 0
          %s487 = smul.addr %s484, 8
          %s488 = scalar_lea.hbm %s5, %s487
          %s489 = sshll.u32 %s480, 4
          %s490 = int_to_ptr.vmem [resolvable:$true] %s489
          %s491 = sshll.u32 %s488, 4
          %s492 = int_to_ptr.hbm [resolvable:$true] %s491
          %497 = dma.vmem_to_hbm [thread:$0]  %s490, 256, %s492, %s477, 128, 128, 8
        $region52: #{tpu_custom_call.1} parent=39 // pred_fallthru
          _
      $region40: #{tpu_custom_call.1} parent=5 // pred_fallthru
        _
      %p498 = scmp.le.s32.totalorder 2, %s18
      // Predicated region
      $region53: #{tpu_custom_call.1} parent=5 // pred_check
        %p499 = pneg %p498
      $region54: #{tpu_custom_call.1} parent=5 // pred_check_branch
        %501 = sbr.rel (%p499) target = $region56
      $region55: #{tpu_custom_call.1} parent=5 // pred_region
        %s502 = ssub.s32 %s18, 2
        // Predicated region
        $region57: #{tpu_custom_call.1} parent=55 // pred_check
          %p503 = pneg %p157
        $region58: #{tpu_custom_call.1} parent=55 // pred_check_branch
          %505 = sbr.rel (%p503) target = $region60
        $region59: #{tpu_custom_call.1} parent=55 // pred_region
          %s506 = sand.u32 %s142, 1
          %s507 = scalar_lea.sflag [#allocation4], %s506
          %s508 = sand.u32 %s142, 1
          %s509 = smul.addr %s508, 16
          %s510 = scalar_lea.vmem [#allocation7], %s509
          %512 = dma.done %s507, 256
        $region60: #{tpu_custom_call.1} parent=55 // pred_fallthru
          _
      $region56: #{tpu_custom_call.1} parent=5 // pred_fallthru
        _
    $region6: #{tpu_custom_call.1} parent=1 // loop_footer
      %s22 = sadd.s32 1, %s18
    $region7: #{tpu_custom_call.1} parent=1 // loop_footer_branch
      %17 = sbr.rel target = $region3
    $region8: #{tpu_custom_call.1} parent=1 // loop_exit
      _
    %513 = vsyncpa [#allocation3], 1
    %s514 = scalar_lea.sflag [#allocation3], 1
    %515 = vsyncpa %s514, 1
    %516 = vsyncpa [#allocation6], 1
    %517 = vsyncpa [#allocation4], 1
    %s518 = scalar_lea.sflag [#allocation4], 1
    %519 = vsyncpa %s518, 1

</llo_original>
